<compile_context>
chip_gen: v5e
topology: v5e:2x2
jax: 0.10.0
libtpu: 0.0.40
codegen_flags: <defaults>
</compile_context>

<pallas_src>
import functools

import jax
import jax.numpy as jnp
from jax.experimental import pallas as pl
from jax.experimental.pallas import tpu as pltpu


_TARGET_BLOCK_BYTES = 4 * 1024 * 1024   # ~4 MiB input blocks -> ~85% of HBM roofline
_TM_MAX = 8192                          # absolute row-tile cap
_TK_MULTI = 2048                        # lane chunk (multiple of 128) for the multi-step path
_SINGLE_STEP_HW_MAX = 2048              # reduce whole H*W in one K step when it fits


def _round_up(n, m):
    return ((n + m - 1) // m) * m


def _sublane_granule(dtype):
    # dtype-native sublane packing: 8 rows for 4-byte, 16 for 2-byte, 32 for 1-byte.
    return max(8, 32 // jnp.dtype(dtype).itemsize)


def _mean_rows_single_kernel(x_ref, o_ref, *, inv_hw):
    """Whole row fits in one block: reduce, scale, store."""
    x = x_ref[...].astype(jnp.float32)
    o_ref[...] = (jnp.sum(x, axis=-1, keepdims=True) * inv_hw).astype(o_ref.dtype)


def _mean_rows_multi_kernel(x_ref, o_ref, acc_ref, *, hw, tk, need_mask, inv_hw):
    """K-step accumulation into a lane-dense (tm, 128) f32 scratch."""
    k = pl.program_id(1)
    last = pl.num_programs(1) - 1

    @pl.when(k == 0)
    def _init():
        acc_ref[...] = jnp.zeros_like(acc_ref)

    def _accumulate(masked):
        x = x_ref[...].astype(jnp.float32)   # f32 accumulation even for bf16/fp16 inputs
        if masked:
            # Only the final chunk can stick out past H*W: zero out-of-range columns
            # so implementation-defined padded reads never corrupt real row sums.
            col = k * tk + jax.lax.broadcasted_iota(jnp.int32, x.shape, 1)
            x = jnp.where(col < hw, x, jnp.float32(0.0))
        acc = acc_ref[...]
        for c in range(tk // 128):           # VALU-only add chain, no XLU in the hot loop
            acc = acc + x[:, c * 128:(c + 1) * 128]
        acc_ref[...] = acc

    if need_mask:
        @pl.when(k < last)
        def _steady():
            _accumulate(False)

        @pl.when(k == last)
        def _ragged():
            _accumulate(True)
    else:
        _accumulate(False)

    @pl.when(k == last)
    def _finalize():
        s = jnp.sum(acc_ref[...], axis=-1, keepdims=True)   # single XLU reduce per row tile
        o_ref[...] = (s * inv_hw).astype(o_ref.dtype)


def lambda_mean23(x):
    """Pallas equivalent of Lambda(lambda x: x.mean(dim=[2, 3])) for NCHW input."""
    B, C, H, W = x.shape
    bc, hw = B * C, H * W
    x_flat = x.reshape(bc, hw)              # free reshape (row-major contiguous)

    itemsize = jnp.dtype(x.dtype).itemsize
    granule = _sublane_granule(x.dtype)
    inv_hw = 1.0 / float(hw)
    rows_padded = _round_up(bc, granule)

    single_step = hw <= _SINGLE_STEP_HW_MAX
    if single_step:
        tk = hw                              # full extent: legal even if not a 128-multiple
        need_mask = False
    else:
        tk = _TK_MULTI                       # multiple of 128
        need_mask = (hw % tk) != 0

    # Row tile from a VMEM byte budget (bigger blocks amortize the ~0.35 us/step overhead).
    budget_rows = max(granule, _TARGET_BLOCK_BYTES // (tk * itemsize))
    tm = min(_TM_MAX, _round_up(budget_rows, granule), rows_padded)
    tm = max(tm, granule)

    # v7x megacore: ensure the "parallel" row axis has >= 2 tiles when possible so both
    # TensorCores get work (no-op on single-core v5e / v6e).
    if pl.cdiv(bc, tm) == 1:
        half = _round_up(-(-bc // 2), granule)
        if granule <= half < tm:
            tm = half

    n_row_tiles = pl.cdiv(bc, tm)

    # VMEM budget from the actual buffers: double-buffered input, lane-padded
    # double-buffered output, f32 accumulator scratch; 2x headroom, <= 32 MiB.
    in_bytes = 2 * tm * tk * itemsize
    out_bytes = 2 * tm * 128 * itemsize
    scratch_bytes = 0 if single_step else tm * 128 * 4
    vmem_limit = int(min(32 * 1024 * 1024,
                         max(16 * 1024 * 1024,
                             2 * (in_bytes + out_bytes + scratch_bytes))))

    cost = pl.CostEstimate(
        flops=bc * hw,
        transcendentals=0,
        bytes_accessed=bc * hw * itemsize + bc * itemsize,
    )

    if single_step:
        kernel = functools.partial(_mean_rows_single_kernel, inv_hw=inv_hw)
        out = pl.pallas_call(
            kernel,
            out_shape=jax.ShapeDtypeStruct((bc, 1), x.dtype),
            grid_spec=pltpu.PrefetchScalarGridSpec(
                num_scalar_prefetch=0,
                grid=(n_row_tiles,),
                in_specs=[pl.BlockSpec((tm, hw), lambda i: (i, 0))],
                out_specs=pl.BlockSpec((tm, 1), lambda i: (i, 0)),
            ),
            compiler_params=pltpu.CompilerParams(
                dimension_semantics=("parallel",),
                vmem_limit_bytes=vmem_limit,
            ),
            cost_estimate=cost,
        )(x_flat)
    else:
        kernel = functools.partial(_mean_rows_multi_kernel, hw=hw, tk=tk,
                                   need_mask=need_mask, inv_hw=inv_hw)
        out = pl.pallas_call(
            kernel,
            out_shape=jax.ShapeDtypeStruct((bc, 1), x.dtype),
            grid_spec=pltpu.PrefetchScalarGridSpec(
                num_scalar_prefetch=0,
                grid=(n_row_tiles, pl.cdiv(hw, tk)),
                in_specs=[pl.BlockSpec((tm, tk), lambda i, k: (i, k))],
                out_specs=pl.BlockSpec((tm, 1), lambda i, k: (i, 0)),
                scratch_shapes=[pltpu.VMEM((tm, 128), jnp.float32)],
            ),
            compiler_params=pltpu.CompilerParams(
                dimension_semantics=("parallel", "arbitrary"),
                vmem_limit_bytes=vmem_limit,
            ),
            cost_estimate=cost,
        )(x_flat)

    return out.reshape(B, C)


class Lambda:
    """JAX mirror of learn2learn.nn.Lambda: wraps an arbitrary callable."""
    # TODO(synk): only the canonical mean(dim=[2, 3]) lambda is kernelized; arbitrary
    # user callables are executed as-is and cannot be generically turned into kernels.

    def __init__(self, lmb):
        self.lmb = lmb

    def __call__(self, *args, **kwargs):
        return self.lmb(*args, **kwargs)


if __name__ == "__main__":
    mean23 = Lambda(jax.jit(lambda_mean23))   # Pallas-backed lambda, as a "module"

    # Case 1: docstring example shape (single K-step path), f32.
    x1 = jax.random.normal(jax.random.PRNGKey(0), (2, 4, 16, 16), dtype=jnp.float32)
    y1 = jax.block_until_ready(mean23(x1))
    assert y1.shape == (2, 4)
    assert jnp.allclose(y1, x1.mean(axis=(2, 3)), atol=1e-5, rtol=1e-5)

    # Case 2: ragged H*W (multi K-step path + masked last chunk) and bc < row granule
    # (exercises padded edge-row tiles / masked writeback).
    x2 = jax.random.normal(jax.random.PRNGKey(1), (1, 2, 48, 48), dtype=jnp.float32)
    y2 = jax.block_until_ready(mean23(x2))
    assert y2.shape == (1, 2)
    assert jnp.allclose(y2, x2.mean(axis=(2, 3)), atol=1e-5, rtol=1e-5)

    # Case 3: bf16 input (16-row sublane granule path).
    x3 = jax.random.normal(jax.random.PRNGKey(2), (2, 3, 16, 16), dtype=jnp.bfloat16)
    y3 = jax.block_until_ready(mean23(x3))
    ref3 = x3.astype(jnp.float32).mean(axis=(2, 3))
    assert y3.shape == (2, 3)
    assert jnp.allclose(y3.astype(jnp.float32), ref3, atol=2e-2, rtol=2e-2)

    print("KERNEL_OK")
</pallas_src>

<mosaic_0001>
module attributes {stable_mosaic.version = 11 : i64} {
  func.func @_mean_rows_single_kernel(%arg0: i32, %arg1: memref<8x256xf32, #tpu.memory_space<vmem>>, %arg2: memref<8x1xf32, #tpu.memory_space<vmem>>) attributes {dimension_semantics = [#tpu.dimension_semantics<parallel>], iteration_bounds = array<i64: 1>, scalar_prefetch = 0 : i64, scratch_operands = 0 : i64, tpu.core_type = #tpu.core_type<tc>, window_params = [{transform_indices = @transform_0, window_bounds = array<i64: 8, 256>}, {transform_indices = @transform_1, window_bounds = array<i64: 8, 1>}]} {
    %c0 = arith.constant 0 : index
    %c0_0 = arith.constant 0 : index
    %0 = vector.load %arg1[%c0, %c0_0] : memref<8x256xf32, #tpu.memory_space<vmem>>, vector<8x256xf32>
    %cst = arith.constant dense<0.000000e+00> : vector<8xf32>
    %1 = vector.multi_reduction <add>, %0, %cst [1] : vector<8x256xf32> to vector<8xf32>
    %2 = vector.shape_cast %1 : vector<8xf32> to vector<8x1xf32>
    %cst_1 = arith.constant 3.906250e-03 : f32
    %3 = vector.broadcast %cst_1 : f32 to vector<8x1xf32>
    %4 = arith.mulf %2, %3 : vector<8x1xf32>
    %c0_2 = arith.constant 0 : index
    %c0_3 = arith.constant 0 : index
    %5 = vector.load %arg2[%c0_2, %c0_3] : memref<8x1xf32, #tpu.memory_space<vmem>>, vector<8x1xf32>
    tpu.vector_store %arg2[%c0_2, %c0_3], %4 {strides = array<i32>} : memref<8x1xf32, #tpu.memory_space<vmem>>, vector<8x1xf32>,
    return
  }
  func.func @transform_0(%arg0: i32) -> (i32, i32) {
    %c0_i32 = arith.constant 0 : i32
    %c0_i32_0 = arith.constant 0 : i32
    return %arg0, %c0_i32 : i32, i32
  }
  func.func @transform_1(%arg0: i32) -> (i32, i32) {
    %c0_i32 = arith.constant 0 : i32
    %c0_i32_0 = arith.constant 0 : i32
    return %arg0, %c0_i32 : i32, i32
  }
}

</mosaic_0001>

<llo_original>
// kernel: lambda_mean23.1
$region0: #{lambda_mean23.1}
  #allocation0 [shape = 'u32[]', space=smem, size = 0x4, offset = 0x4, fixed_abs, tag = 'smem constant byte address 0x4 - core index']
  #allocation1 [shape = 'u32[72,128]{1,0:T(1,128)}', space=vmem, size = 0x9000, scoped, tag = 'internal scratch']
  %s0 = inlined_call_operand.vmem [shape: f32[8,256], index: 0, kind: input, shape index: {}]
  %s1 = inlined_call_operand.vmem [shape: f32[8,1], index: 1, kind: output, shape index: {}]
  %s2 = sld [smem:[#allocation0]]
  $region14: #{lambda_mean23.1} parent=0
    _
  %s4 = ssub.s32 1, %s2
  %s5 = scalar_select 0, %s4, %s2
  // Predicated region
  $region2: #{lambda_mean23.1} parent=0 // pred_check
    _
  $region3: #{lambda_mean23.1} parent=0 // pred_check_branch
    %7 = sbr.rel (0) target = $region5
  $region4: #{lambda_mean23.1} parent=0 // pred_region
    _
  $region5: #{lambda_mean23.1} parent=0 // pred_fallthru
    _
  %v8 = vld [vmem:[%s0] sm:$0xff]
  %v9 = vld [vmem:[%s0 + $0x8] sm:$0xff]
  %v10 = vadd.f32 %v8, %v9
  %11 = vadd.xlane.f32.xlu0 %v10
  %v12 = vpop.xlane.xlu0 %11
  %v13 = vmul.f32 %v12, 0.00390625
  %vm14 = vcmask 7168
  %15 = vst.msk [vmem:[%s1] sm:$0xff] %vm14, %v13
  // Predicated region
  $region6: #{lambda_mean23.1} parent=0 // pred_check
    _
  $region7: #{lambda_mean23.1} parent=0 // pred_check_branch
    %17 = sbr.rel (0) target = $region9
  $region8: #{lambda_mean23.1} parent=0 // pred_region
    _
  $region9: #{lambda_mean23.1} parent=0 // pred_fallthru
    _
  // Predicated region
  $region10: #{lambda_mean23.1} parent=0 // pred_check
    _
  $region11: #{lambda_mean23.1} parent=0 // pred_check_branch
    %19 = sbr.rel (0) target = $region13
  $region12: #{lambda_mean23.1} parent=0 // pred_region
    _
  $region13: #{lambda_mean23.1} parent=0 // pred_fallthru
    _

</llo_original>
